<compile_context>
chip_gen: v7x
topology: tpu7x:2x2x1
jax: 0.10.0
libtpu: 0.0.40
codegen_flags: <defaults>
</compile_context>

<pallas_src>
import jax
import jax.numpy as jnp
from jax.experimental import pallas as pl
from jax.experimental.pallas import tpu as pltpu


def text_sentiment_kernel(ids_ref, table_ref, w_ref, b_ref, out_ref, acc_ref):
    v = pl.program_id(1)            # vocab-tile index (reduction axis, last)
    n_vblk = pl.num_programs(1)

    ids = ids_ref[...]                              # [Bblk*c, 1] int32
    n_tok = ids.shape[0]
    block_v = table_ref.shape[0]
    block_b = acc_ref.shape[0]
    c = n_tok // block_b

    @pl.when(v == 0)
    def _init():
        acc_ref[...] = jnp.zeros_like(acc_ref)

    # One-hot over this vocab tile only (f32: the 8-sublane tiling makes the
    # group-of-8 reshape below tile-aligned; the compare is pure VPU work).
    vocab_iota = (jax.lax.broadcasted_iota(jnp.int32, (n_tok, block_v), 1)
                  + v * block_v)                    # [Nblk, Vt]
    onehot = (vocab_iota == ids).astype(jnp.float32)

    # Fold the avg-pool into the gather: per-group vocab counts (no MXU).
    counts = onehot.reshape(block_b, c, block_v).sum(axis=1)   # [Bblk, Vt]

    # Single MXU matmul per (batch block, vocab tile); bf16 operands (counts are
    # small integers -> exact), f32 accumulation.
    acc_ref[...] += jnp.dot(counts.astype(jnp.bfloat16), table_ref[...],
                            preferred_element_type=jnp.float32)

    @pl.when(v == n_vblk - 1)
    def _finalize():
        pooled = acc_ref[...] * (1.0 / c)           # group mean, [Bblk, D] f32
        out = jnp.dot(pooled, w_ref[...],
                      preferred_element_type=jnp.float32) + b_ref[...]
        out_ref[...] = out.astype(out_ref.dtype)    # lane-dense [Bblk, 128] store


def text_sentiment_forward(text, emb_table, fc_w, fc_b, batch_size,
                           block_b=8, block_v=None):
    """text: [N_raw] int; emb_table: [V, D]; fc_w: [num_class, D]; fc_b: [num_class]."""
    n_raw = text.shape[0]
    c = n_raw // batch_size
    n = batch_size * c
    vocab, d = emb_table.shape
    num_class = fc_w.shape[0]

    if block_v is None:
        block_v = vocab
    assert batch_size % block_b == 0
    assert vocab % block_v == 0
    assert block_v == vocab or block_v % 8 == 0
    tok_blk = block_b * c
    assert tok_blk == n or tok_blk % 8 == 0

    # Glue (truncation / transpose / padding) -- no compute.
    ids = text[:n].astype(jnp.int32).reshape(n, 1)
    table_bf16 = emb_table.astype(jnp.bfloat16)         # halves table HBM bytes
    c_pad = 128                                          # lane-dense output
    assert num_class <= c_pad
    w_pad = jnp.zeros((d, c_pad), jnp.float32).at[:, :num_class].set(fc_w.T)
    b_pad = jnp.zeros((1, c_pad), jnp.float32).at[:, :num_class].set(fc_b)

    grid = (batch_size // block_b, vocab // block_v)     # (parallel, arbitrary)

    cost = pl.CostEstimate(
        flops=2 * batch_size * vocab * d + 2 * batch_size * d * c_pad,
        transcendentals=0,
        bytes_accessed=(vocab * d * 2 + n * 4 + batch_size * c_pad * 4
                        + d * c_pad * 4 + c_pad * 4),
    )

    out_padded = pl.pallas_call(
        text_sentiment_kernel,
        out_shape=jax.ShapeDtypeStruct((batch_size, c_pad), jnp.float32),
        grid_spec=pltpu.PrefetchScalarGridSpec(
            num_scalar_prefetch=0,
            grid=grid,
            in_specs=[
                pl.BlockSpec((tok_blk, 1), lambda b, v: (b, 0)),   # token ids
                pl.BlockSpec((block_v, d), lambda b, v: (v, 0)),   # table tile (HBM->VMEM)
                pl.BlockSpec((d, c_pad), lambda b, v: (0, 0)),     # fc weight (padded)
                pl.BlockSpec((1, c_pad), lambda b, v: (0, 0)),     # fc bias  (padded)
            ],
            out_specs=pl.BlockSpec((block_b, c_pad), lambda b, v: (b, 0)),
            scratch_shapes=[pltpu.VMEM((block_b, d), jnp.float32)],  # pooled-sum acc
        ),
        compiler_params=pltpu.CompilerParams(
            dimension_semantics=("parallel", "arbitrary")),
        cost_estimate=cost,
    )(ids, table_bf16, w_pad, b_pad)

    return out_padded[:, :num_class]


if __name__ == "__main__":
    # Small, deterministic problem consistent with the module's forward.
    batch_size = 16          # matches module-level `batch_size`
    embed_dim = 32
    num_class = 4
    vocab_size = 64
    c = 8
    n_raw = batch_size * c + 3   # 131 tokens; forward truncates to 128

    key = jax.random.PRNGKey(0)
    k_ids, k_emb, k_fc = jax.random.split(key, 3)

    text = jax.random.randint(k_ids, (n_raw,), 0, vocab_size, dtype=jnp.int32)
    # init_weights(): uniform(-0.5, 0.5) for embedding & fc weight, zero bias.
    emb_table = jax.random.uniform(k_emb, (vocab_size, embed_dim),
                                   jnp.float32, -0.5, 0.5)
    fc_w = jax.random.uniform(k_fc, (num_class, embed_dim), jnp.float32, -0.5, 0.5)
    fc_b = jnp.zeros((num_class,), jnp.float32)

    out = text_sentiment_forward(text, emb_table, fc_w, fc_b, batch_size,
                                 block_b=8, block_v=32)
    out = jax.block_until_ready(out)

    # Pure-JAX f32 reference of the PyTorch forward.
    n = batch_size * c
    emb_ref = emb_table[text[:n]]                                  # [N, D]
    pooled_ref = emb_ref.reshape(batch_size, c, embed_dim).mean(axis=1)
    ref = pooled_ref @ fc_w.T + fc_b

    assert out.shape == (batch_size, num_class)
    # Table is fed to the MXU in bf16 (f32 accumulation) -> loosened tolerance.
    assert jnp.allclose(out, ref, atol=3e-2, rtol=3e-2), float(jnp.max(jnp.abs(out - ref)))
    print("KERNEL_OK")
</pallas_src>

<mosaic_0001>
module attributes {stable_mosaic.version = 11 : i64} {
  func.func @text_sentiment_kernel(%arg0: i32, %arg1: i32, %arg2: memref<64x1xi32, #tpu.memory_space<vmem>>, %arg3: memref<32x32xbf16, #tpu.memory_space<vmem>>, %arg4: memref<32x128xf32, #tpu.memory_space<vmem>>, %arg5: memref<1x128xf32, #tpu.memory_space<vmem>>, %arg6: memref<8x128xf32, #tpu.memory_space<vmem>>, %arg7: memref<8x32xf32, #tpu.memory_space<vmem>>) attributes {dimension_semantics = [#tpu.dimension_semantics<parallel>, #tpu.dimension_semantics<arbitrary>], iteration_bounds = array<i64: 2, 2>, scalar_prefetch = 0 : i64, scratch_operands = 1 : i64, tpu.core_type = #tpu.core_type<tc>, window_params = [{transform_indices = @transform_0, window_bounds = array<i64: 64, 1>}, {transform_indices = @transform_1, window_bounds = array<i64: 32, 32>}, {pipeline_mode = #tpu.pipeline_mode<synchronous>, transform_indices = @transform_2, window_bounds = array<i64: 32, 128>}, {pipeline_mode = #tpu.pipeline_mode<synchronous>, transform_indices = @transform_3, window_bounds = array<i64: 1, 128>}, {transform_indices = @transform_4, window_bounds = array<i64: 8, 128>}]} {
    %c0 = arith.constant 0 : index
    %c0_0 = arith.constant 0 : index
    %0 = vector.load %arg2[%c0, %c0_0] : memref<64x1xi32, #tpu.memory_space<vmem>>, vector<64x1xi32>
    %c0_i32 = arith.constant 0 : i32
    %1 = arith.cmpi eq, %arg1, %c0_i32 : i32
    %2 = arith.extui %1 : i1 to i32
    %c0_i32_1 = arith.constant 0 : i32
    %3 = arith.cmpi ne, %2, %c0_i32_1 : i32
    scf.if %3 {
      %cst_10 = arith.constant 0.000000e+00 : f32
      %23 = vector.broadcast %cst_10 : f32 to vector<8x32xf32>
      %c0_11 = arith.constant 0 : index
      %c0_12 = arith.constant 0 : index
      %24 = vector.load %arg7[%c0_11, %c0_12] : memref<8x32xf32, #tpu.memory_space<vmem>>, vector<8x32xf32>
      tpu.vector_store %arg7[%c0_11, %c0_12], %23 {strides = array<i32>} : memref<8x32xf32, #tpu.memory_space<vmem>>, vector<8x32xf32>,
    } else {
    }
    %4 = tpu.iota {dimensions = array<i32: 1>} : vector<64x32xi32>
    %c32_i32 = arith.constant 32 : i32
    %5 = arith.muli %arg1, %c32_i32 : i32
    %6 = vector.broadcast %5 : i32 to vector<64x32xi32>
    %7 = arith.addi %4, %6 : vector<64x32xi32>
    %8 = vector.broadcast %0 : vector<64x1xi32> to vector<64x32xi32>
    %9 = arith.cmpi eq, %7, %8 : vector<64x32xi32>
    %10 = arith.extui %9 : vector<64x32xi1> to vector<64x32xi32>
    %11 = arith.sitofp %10 : vector<64x32xi32> to vector<64x32xf32>
    %12 = vector.shape_cast %11 : vector<64x32xf32> to vector<8x8x32xf32>
    %cst = arith.constant dense<0.000000e+00> : vector<8x32xf32>
    %13 = vector.multi_reduction <add>, %12, %cst [1] : vector<8x8x32xf32> to vector<8x32xf32>
    %c0_2 = arith.constant 0 : index
    %c0_3 = arith.constant 0 : index
    %14 = vector.load %arg7[%c0_2, %c0_3] : memref<8x32xf32, #tpu.memory_space<vmem>>, vector<8x32xf32>
    %15 = arith.truncf %13 : vector<8x32xf32> to vector<8x32xbf16>
    %c0_4 = arith.constant 0 : index
    %c0_5 = arith.constant 0 : index
    %16 = vector.load %arg3[%c0_4, %c0_5] : memref<32x32xbf16, #tpu.memory_space<vmem>>, vector<32x32xbf16>
    %cst_6 = arith.constant dense<0.000000e+00> : vector<8x32xf32>
    %17 = tpu.matmul %15, %16, %cst_6 {dimension_numbers = #tpu.dot_dimension_numbers<[1], [0], [0], [1], [0, 0, 1, 1], [], []>} : vector<8x32xbf16>, vector<32x32xbf16>, vector<8x32xf32> -> vector<8x32xf32>
    %18 = arith.addf %14, %17 : vector<8x32xf32>
    %c0_7 = arith.constant 0 : index
    %c0_8 = arith.constant 0 : index
    %19 = vector.load %arg7[%c0_7, %c0_8] : memref<8x32xf32, #tpu.memory_space<vmem>>, vector<8x32xf32>
    tpu.vector_store %arg7[%c0_7, %c0_8], %18 {strides = array<i32>} : memref<8x32xf32, #tpu.memory_space<vmem>>, vector<8x32xf32>,
    %c1_i32 = arith.constant 1 : i32
    %20 = arith.cmpi eq, %arg1, %c1_i32 : i32
    %21 = arith.extui %20 : i1 to i32
    %c0_i32_9 = arith.constant 0 : i32
    %22 = arith.cmpi ne, %21, %c0_i32_9 : i32
    scf.if %22 {
      %c0_10 = arith.constant 0 : index
      %c0_11 = arith.constant 0 : index
      %23 = vector.load %arg7[%c0_10, %c0_11] : memref<8x32xf32, #tpu.memory_space<vmem>>, vector<8x32xf32>
      %cst_12 = arith.constant 1.250000e-01 : f32
      %24 = vector.broadcast %cst_12 : f32 to vector<8x32xf32>
      %25 = arith.mulf %23, %24 : vector<8x32xf32>
      %c0_13 = arith.constant 0 : index
      %c0_14 = arith.constant 0 : index
      %26 = vector.load %arg4[%c0_13, %c0_14] : memref<32x128xf32, #tpu.memory_space<vmem>>, vector<32x128xf32>
      %cst_15 = arith.constant dense<0.000000e+00> : vector<8x128xf32>
      %27 = tpu.matmul %25, %26, %cst_15 {dimension_numbers = #tpu.dot_dimension_numbers<[1], [0], [0], [1], [0, 0, 1, 1], [], []>} : vector<8x32xf32>, vector<32x128xf32>, vector<8x128xf32> -> vector<8x128xf32>
      %c0_16 = arith.constant 0 : index
      %c0_17 = arith.constant 0 : index
      %28 = vector.load %arg5[%c0_16, %c0_17] : memref<1x128xf32, #tpu.memory_space<vmem>>, vector<1x128xf32>
      %29 = vector.broadcast %28 : vector<1x128xf32> to vector<8x128xf32>
      %30 = arith.addf %27, %29 : vector<8x128xf32>
      %c0_18 = arith.constant 0 : index
      %c0_19 = arith.constant 0 : index
      %31 = vector.load %arg6[%c0_18, %c0_19] : memref<8x128xf32, #tpu.memory_space<vmem>>, vector<8x128xf32>
      tpu.vector_store %arg6[%c0_18, %c0_19], %30 {strides = array<i32>} : memref<8x128xf32, #tpu.memory_space<vmem>>, vector<8x128xf32>,
    } else {
    }
    return
  }
  func.func @transform_0(%arg0: i32, %arg1: i32) -> (i32, i32) {
    %c0_i32 = arith.constant 0 : i32
    %c0_i32_0 = arith.constant 0 : i32
    return %arg0, %c0_i32 : i32, i32
  }
  func.func @transform_1(%arg0: i32, %arg1: i32) -> (i32, i32) {
    %c0_i32 = arith.constant 0 : i32
    %c0_i32_0 = arith.constant 0 : i32
    return %arg1, %c0_i32 : i32, i32
  }
  func.func @transform_2(%arg0: i32, %arg1: i32) -> (i32, i32) {
    %c0_i32 = arith.constant 0 : i32
    %c0_i32_0 = arith.constant 0 : i32
    %c0_i32_1 = arith.constant 0 : i32
    return %c0_i32, %c0_i32_0 : i32, i32
  }
  func.func @transform_3(%arg0: i32, %arg1: i32) -> (i32, i32) {
    %c0_i32 = arith.constant 0 : i32
    %c0_i32_0 = arith.constant 0 : i32
    %c0_i32_1 = arith.constant 0 : i32
    return %c0_i32, %c0_i32_0 : i32, i32
  }
  func.func @transform_4(%arg0: i32, %arg1: i32) -> (i32, i32) {
    %c0_i32 = arith.constant 0 : i32
    %c0_i32_0 = arith.constant 0 : i32
    return %arg0, %c0_i32 : i32, i32
  }
}

</mosaic_0001>

<llo_original>
// kernel: tpu_custom_call.1
$region0: #{tpu_custom_call.1}
  #allocation0 [shape = 'u32[]', space=smem, size = 0x4, offset = 0x4, fixed_abs, tag = 'smem constant byte address 0x4 - core index']
  #allocation1 [shape = 'u32[144,128]{1,0:T(1,128)}', space=vmem, size = 0x12000, scoped, tag = 'internal scratch']
  #allocation2 [shape = 'f32[8,32]{1,0:T(8,128)}', space=vmem, size = 0x1000, scoped, tag = 'scratch operand']
  %s0 = inlined_call_operand.vmem [shape: s32[128,1], index: 0, kind: input, shape index: {}]
  %s1 = inlined_call_operand.vmem [shape: bf16[64,32], index: 1, kind: input, shape index: {}]
  %s2 = inlined_call_operand.vmem [shape: f32[32,128], index: 2, kind: input, shape index: {}]
  %s3 = inlined_call_operand.vmem [shape: f32[1,128], index: 3, kind: input, shape index: {}]
  %s4 = inlined_call_operand.hbm [shape: f32[16,128], index: 4, kind: output, shape index: {}]
  %s5 = sld [smem:[#allocation0]]
  $region57: #{tpu_custom_call.1} parent=0
    _
  %s7 = ssub.s32 1, %s5
  %s8 = scalar_select 0, %s7, %s5
  $region1: #{tpu_custom_call.1} parent=0
    #allocation3 [shape = 'u8[8192]{0}', space=vmem, size = 0x2000, scoped, tag = 'output window, operand 0']
    #allocation4 [shape = 's32[2]{0}', space=sflag, size = 0x8, scoped, tag = 'scoped memory for tpu_custom_call.1']
    %9 = vsyncpa [#allocation4], 0
    %s10 = scalar_lea.sflag [#allocation4], 1
    %11 = vsyncpa %s10, 0
    loop: start=0, step=1, limit=6
    $region2: #{tpu_custom_call.1} parent=1 // loop_pre_header
      _
    $region3: #{tpu_custom_call.1} parent=1 // loop_header
      %s13 = sphi 0, %s17
      %p14 = scmp.ge.s32.totalorder %s13, 6
      %s20 = sphi 0, %s32
      %s21 = sphi 0, %s28
      %s22 = sphi 0, %s20
      %s23 = sphi 0, %s21
      %s24 = sphi 0, %s22
      %s25 = sphi 0, %s23
      %s35 = sphi 0, %s37
      %s38 = sphi 0, %s35
      %s39 = sphi 0, %s38
      %s55 = sphi 0, %s39
      %s61 = sphi 0, %s63
      %s64 = sphi 0, %s61
      %s65 = sphi 0, %s64
      %s81 = sphi 0, %s65
      %s85 = sphi 0, %s85
      %s87 = sphi 0, %s85
      %s88 = sphi 0, %s87
      %s102 = sphi 0, %s88
      %s106 = sphi 0, %s106
      %s108 = sphi 0, %s106
      %s109 = sphi 0, %s108
      %s123 = sphi 0, %s109
      %s129 = sphi 0, %s131
      %s132 = sphi 0, %s129
      %s133 = sphi 0, %s132
      %s149 = sphi 0, %s133
    $region4: #{tpu_custom_call.1} parent=1 // loop_header_branch
      %16 = sbr.rel (%p14) target = $region8
    $region5: #{tpu_custom_call.1} parent=1 // loop_body
      %s18 = ssub.s32 %s13, 1
      %s19 = ssub.s32 %s13, 2
      %s26 = sadd.s32 1, %s21
      %p27 = scmp.ge.s32.totalorder %s26, 2
      %s28 = scalar_select %p27, 0, %s26
      %s29 = sadd.s32 1, %s20
      %s30 = scalar_select %p27, %s29, %s20
      %p31 = scmp.ge.s32.totalorder %s30, 2
      %s32 = scalar_select %p31, 0, %s30
      %s33 = ssub.s32 %s20, %s32
      %p34 = scmp.eq.s32.totalorder %s33, 0
      %s36 = sadd.s32 %s35, 1
      %s37 = scalar_select %p34, %s35, %s36
      %p40 = pneg %p34
      %p41 = scmp.eq.s32.totalorder %s13, 3
      %p42 = por %p40, %p41
      %p43 = scmp.ne.s32.totalorder %s35, %s38
      %p44 = scmp.eq.s32.totalorder %s13, 0
      %p45 = por %p43, %p44
      %p46 = scmp.ne.s32.totalorder %s35, %s38
      %p47 = scmp.eq.s32.totalorder %s18, 3
      %p48 = por %p46, %p47
      %p49 = scmp.ne.s32.totalorder %s38, %s39
      %p50 = scmp.eq.s32.totalorder %s18, 0
      %p51 = por %p49, %p50
      %p52 = scmp.ne.s32.totalorder %s38, %s39
      %p53 = scmp.eq.s32.totalorder %s19, 3
      %p54 = por %p52, %p53
      %p56 = scmp.ne.s32.totalorder %s39, %s55
      %p57 = scmp.eq.s32.totalorder %s19, 0
      %p58 = por %p56, %p57
      %s59 = ssub.s32 %s21, %s28
      %p60 = scmp.eq.s32.totalorder %s59, 0
      %s62 = sadd.s32 %s61, 1
      %s63 = scalar_select %p60, %s61, %s62
      %p66 = pneg %p60
      %p67 = scmp.eq.s32.totalorder %s13, 3
      %p68 = por %p66, %p67
      %p69 = scmp.ne.s32.totalorder %s61, %s64
      %p70 = scmp.eq.s32.totalorder %s13, 0
      %p71 = por %p69, %p70
      %p72 = scmp.ne.s32.totalorder %s61, %s64
      %p73 = scmp.eq.s32.totalorder %s18, 3
      %p74 = por %p72, %p73
      %p75 = scmp.ne.s32.totalorder %s64, %s65
      %p76 = scmp.eq.s32.totalorder %s18, 0
      %p77 = por %p75, %p76
      %p78 = scmp.ne.s32.totalorder %s64, %s65
      %p79 = scmp.eq.s32.totalorder %s19, 3
      %p80 = por %p78, %p79
      %p82 = scmp.ne.s32.totalorder %s65, %s81
      %p83 = scmp.eq.s32.totalorder %s19, 0
      %p84 = por %p82, %p83
      %s86 = sadd.s32 %s85, 1
      %p89 = scmp.eq.s32.totalorder %s13, 3
      %p90 = scmp.ne.s32.totalorder %s85, %s87
      %p91 = scmp.eq.s32.totalorder %s13, 0
      %p92 = por %p90, %p91
      %p93 = scmp.ne.s32.totalorder %s85, %s87
      %p94 = scmp.eq.s32.totalorder %s18, 3
      %p95 = por %p93, %p94
      %p96 = scmp.ne.s32.totalorder %s87, %s88
      %p97 = scmp.eq.s32.totalorder %s18, 0
      %p98 = por %p96, %p97
      %p99 = scmp.ne.s32.totalorder %s87, %s88
      %p100 = scmp.eq.s32.totalorder %s19, 3
      %p101 = por %p99, %p100
      %p103 = scmp.ne.s32.totalorder %s88, %s102
      %p104 = scmp.eq.s32.totalorder %s19, 0
      %p105 = por %p103, %p104
      %s107 = sadd.s32 %s106, 1
      %p110 = scmp.eq.s32.totalorder %s13, 3
      %p111 = scmp.ne.s32.totalorder %s106, %s108
      %p112 = scmp.eq.s32.totalorder %s13, 0
      %p113 = por %p111, %p112
      %p114 = scmp.ne.s32.totalorder %s106, %s108
      %p115 = scmp.eq.s32.totalorder %s18, 3
      %p116 = por %p114, %p115
      %p117 = scmp.ne.s32.totalorder %s108, %s109
      %p118 = scmp.eq.s32.totalorder %s18, 0
      %p119 = por %p117, %p118
      %p120 = scmp.ne.s32.totalorder %s108, %s109
      %p121 = scmp.eq.s32.totalorder %s19, 3
      %p122 = por %p120, %p121
      %p124 = scmp.ne.s32.totalorder %s109, %s123
      %p125 = scmp.eq.s32.totalorder %s19, 0
      %p126 = por %p124, %p125
      %s127 = ssub.s32 %s20, %s32
      %p128 = scmp.eq.s32.totalorder %s127, 0
      %s130 = sadd.s32 %s129, 1
      %s131 = scalar_select %p128, %s129, %s130
      %p134 = pneg %p128
      %p135 = scmp.eq.s32.totalorder %s13, 3
      %p136 = por %p134, %p135
      %p137 = scmp.ne.s32.totalorder %s129, %s132
      %p138 = scmp.eq.s32.totalorder %s13, 0
      %p139 = por %p137, %p138
      %p140 = scmp.ne.s32.totalorder %s129, %s132
      %p141 = scmp.eq.s32.totalorder %s18, 3
      %p142 = por %p140, %p141
      %p143 = scmp.ne.s32.totalorder %s132, %s133
      %p144 = scmp.eq.s32.totalorder %s18, 0
      %p145 = por %p143, %p144
      %p146 = scmp.ne.s32.totalorder %s132, %s133
      %p147 = scmp.eq.s32.totalorder %s19, 3
      %p148 = por %p146, %p147
      %p150 = scmp.ne.s32.totalorder %s133, %s149
      %p151 = scmp.eq.s32.totalorder %s19, 0
      %p152 = por %p150, %p151
      %p153 = scmp.le.s32.totalorder 1, %s13
      %p154 = scmp.lt.s32.totalorder %s13, 5
      %p155 = pnand %p153, %p154
      %p156 = pneg %p155
      // Predicated region
      $region9: #{tpu_custom_call.1} parent=5 // pred_check
        _
      $region10: #{tpu_custom_call.1} parent=5 // pred_check_branch
        %158 = sbr.rel (%p155) target = $region12
      $region11: #{tpu_custom_call.1} parent=5 // pred_region
        %s159 = ssub.s32 %s13, 1
        // Predicated region
        $region13: #{tpu_custom_call.1} parent=11 // pred_check
          %p160 = pneg %p98
        $region14: #{tpu_custom_call.1} parent=11 // pred_check_branch
          %162 = sbr.rel (%p160) target = $region16
        $region15: #{tpu_custom_call.1} parent=11 // pred_region
          _
        $region16: #{tpu_custom_call.1} parent=11 // pred_fallthru
          _
        // Predicated region
        $region17: #{tpu_custom_call.1} parent=11 // pred_check
          %p163 = pneg %p119
        $region18: #{tpu_custom_call.1} parent=11 // pred_check_branch
          %165 = sbr.rel (%p163) target = $region20
        $region19: #{tpu_custom_call.1} parent=11 // pred_region
          _
        $region20: #{tpu_custom_call.1} parent=11 // pred_fallthru
          _
      $region12: #{tpu_custom_call.1} parent=5 // pred_fallthru
        _
      %p166 = scmp.lt.s32.totalorder %s13, 4
      // Predicated region
      $region21: #{tpu_custom_call.1} parent=5 // pred_check
        %p167 = pneg %p166
      $region22: #{tpu_custom_call.1} parent=5 // pred_check_branch
        %169 = sbr.rel (%p167) target = $region24
      $region23: #{tpu_custom_call.1} parent=5 // pred_region
        // Predicated region
        $region25: #{tpu_custom_call.1} parent=23 // pred_check
          %p170 = pneg %p45
        $region26: #{tpu_custom_call.1} parent=23 // pred_check_branch
          %172 = sbr.rel (%p170) target = $region28
        $region27: #{tpu_custom_call.1} parent=23 // pred_region
          %s173 = smul.u32 8, %s20
          %p174 = scmp.lt.s32.totalorder %s173, 15
          %s175 = scalar_select %p174, %s173, 15
          %s176 = smul.addr %s175, 8
          %s177 = scalar_lea.vmem %s0, %s176
          %s178 = smul.u32 8, %s20
        $region28: #{tpu_custom_call.1} parent=23 // pred_fallthru
          _
        // Predicated region
        $region29: #{tpu_custom_call.1} parent=23 // pred_check
          %p179 = pneg %p71
        $region30: #{tpu_custom_call.1} parent=23 // pred_check_branch
          %181 = sbr.rel (%p179) target = $region32
        $region31: #{tpu_custom_call.1} parent=23 // pred_region
          %s182 = smul.u32 4, %s21
          %p183 = scmp.lt.s32.totalorder %s182, 7
          %s184 = scalar_select %p183, %s182, 7
          %s185 = smul.addr %s184, 4
          %s186 = scalar_lea.vmem %s1, %s185
          %s187 = smul.u32 4, %s21
        $region32: #{tpu_custom_call.1} parent=23 // pred_fallthru
          _
      $region24: #{tpu_custom_call.1} parent=5 // pred_fallthru
        _
      %p188 = scmp.le.s32.totalorder 1, %s13
      %p189 = scmp.lt.s32.totalorder %s13, 5
      %p190 = pnand %p188, %p189
      %p191 = pneg %p190
      // Predicated region
      $region33: #{tpu_custom_call.1} parent=5 // pred_check
        _
      $region34: #{tpu_custom_call.1} parent=5 // pred_check_branch
        %193 = sbr.rel (%p190) target = $region36
      $region35: #{tpu_custom_call.1} parent=5 // pred_region
        %s194 = ssub.s32 %s13, 1
        %s195 = smul.u32 8, %s22
        %p196 = scmp.lt.s32.totalorder %s195, 15
        %s197 = scalar_select %p196, %s195, 15
        %s198 = smul.addr %s197, 8
        %s199 = scalar_lea.vmem %s0, %s198
        %p200 = pneg %p51
        %p201 = pneg %p48
        %s202 = smul.u32 4, %s23
        %p203 = scmp.lt.s32.totalorder %s202, 7
        %s204 = scalar_select %p203, %s202, 7
        %s205 = smul.addr %s204, 4
        %s206 = scalar_lea.vmem %s1, %s205
        %p207 = pneg %p77
        %p208 = pneg %p74
        %p209 = pneg %p98
        %p210 = pneg %p95
        %p211 = pneg %p119
        %p212 = pneg %p116
        %p213 = pneg %p145
        %p214 = pneg %p142
        %s215 = sand.u32 %s132, 1
        %s216 = scalar_lea.sflag [#allocation4], %s215
        %s217 = sand.u32 %s132, 1
        %s218 = smul.addr %s217, 8
        %s219 = scalar_lea.vmem [#allocation3], %s218
        %s220 = smul.u32 8, %s22
        %p221 = scmp.lt.s32.totalorder %s220, 15
        %s222 = scalar_select %p221, %s220, 15
        %s223 = smul.addr %s222, 8
        %s224 = scalar_lea.vmem %s0, %s223
        %s225 = smul.u32 8, %s22
        %s226 = smul.u32 4, %s23
        %p227 = scmp.lt.s32.totalorder %s226, 7
        %s228 = scalar_select %p227, %s226, 7
        %s229 = smul.addr %s228, 4
        %s230 = scalar_lea.vmem %s1, %s229
        %s231 = smul.u32 4, %s23
        %v233 = vld [vmem:[%s224] sm:$0xff]
        %v234 = vld [vmem:[%s224 + $0x8] sm:$0xff]
        %v235 = vld [vmem:[%s224 + $0x10] sm:$0xff]
        %v236 = vld [vmem:[%s224 + $0x18] sm:$0xff]
        %v237 = vld [vmem:[%s224 + $0x20] sm:$0xff]
        %v238 = vld [vmem:[%s224 + $0x28] sm:$0xff]
        %v239 = vld [vmem:[%s224 + $0x30] sm:$0xff]
        %v240 = vld [vmem:[%s224 + $0x38] sm:$0xff]
        %p241 = scmp.eq.s32.totalorder %s23, 0
        // Predicated region
        $region37: #{tpu_custom_call.1} parent=35 // pred_check
          %p242 = pneg %p241
        $region38: #{tpu_custom_call.1} parent=35 // pred_check_branch
          %244 = sbr.rel (%p242) target = $region40
        $region39: #{tpu_custom_call.1} parent=35 // pred_region
          %vm245 = vcmask 261120
          %246 = vst.msk [vmem:[#allocation2] sm:$0xff] %vm245, 0.0
        $region40: #{tpu_custom_call.1} parent=35 // pred_fallthru
          _
        %v247 = vlaneseq
        %v248 = vand.u32 %v247, 127
        %s249 = smul.u32 %s23, 32
        %v250 = vstv %s249
        %v251 = vadd.s32 %v248, %v250
        %252 = vset.pattern.permute.xlu0 0
        %253 = vperm.xlu0 %252, %v233
        %v254 = vpop.permute.xlu0 %253
        %255 = vset.pattern.permute.xlu0 0
        %256 = vperm.xlu0 %255, %v234
        %v257 = vpop.permute.xlu0 %256
        %258 = vset.pattern.permute.xlu0 0
        %259 = vperm.xlu0 %258, %v235
        %v260 = vpop.permute.xlu0 %259
        %261 = vset.pattern.permute.xlu0 0
        %262 = vperm.xlu0 %261, %v236
        %v263 = vpop.permute.xlu0 %262
        %264 = vset.pattern.permute.xlu0 0
        %265 = vperm.xlu0 %264, %v237
        %v266 = vpop.permute.xlu0 %265
        %267 = vset.pattern.permute.xlu0 0
        %268 = vperm.xlu0 %267, %v238
        %v269 = vpop.permute.xlu0 %268
        %270 = vset.pattern.permute.xlu0 0
        %271 = vperm.xlu0 %270, %v239
        %v272 = vpop.permute.xlu0 %271
        %273 = vset.pattern.permute.xlu0 0
        %274 = vperm.xlu0 %273, %v240
        %v275 = vpop.permute.xlu0 %274
        %vm276 = vcmp.eq.s32.totalorder %v251, %v254
        %vm277 = vcmp.eq.s32.totalorder %v251, %v257
        %vm278 = vcmp.eq.s32.totalorder %v251, %v260
        %vm279 = vcmp.eq.s32.totalorder %v251, %v263
        %vm280 = vcmp.eq.s32.totalorder %v251, %v266
        %vm281 = vcmp.eq.s32.totalorder %v251, %v269
        %vm282 = vcmp.eq.s32.totalorder %v251, %v272
        %vm283 = vcmp.eq.s32.totalorder %v251, %v275
        %v284 = vsel %vm276, 1, 0
        %v285 = vsel %vm277, 1, 0
        %v286 = vsel %vm278, 1, 0
        %v287 = vsel %vm279, 1, 0
        %v288 = vsel %vm280, 1, 0
        %v289 = vsel %vm281, 1, 0
        %v290 = vsel %vm282, 1, 0
        %v291 = vsel %vm283, 1, 0
        %v292 = vcvt.s32.f32 %v284
        %v293 = vcvt.s32.f32 %v285
        %v294 = vcvt.s32.f32 %v286
        %v295 = vcvt.s32.f32 %v287
        %v296 = vcvt.s32.f32 %v288
        %v297 = vcvt.s32.f32 %v289
        %v298 = vcvt.s32.f32 %v290
        %v299 = vcvt.s32.f32 %v291
        %vm300 = vcmask 261120
        %v301 = vsel %vm300, %v292, 0.0
        %v302 = vrot.slane %v301, 4
        %v303 = vadd.f32 %v301, %v302
        %v304 = vrot.slane %v303, 2
        %v305 = vadd.f32 %v303, %v304
        %v306 = vrot.slane %v305, 1
        %v307 = vadd.f32 %v305, %v306
        %v308 = vsel %vm300, %v293, 0.0
        %v309 = vrot.slane %v308, 4
        %v310 = vadd.f32 %v308, %v309
        %v311 = vrot.slane %v310, 2
        %v312 = vadd.f32 %v310, %v311
        %v313 = vrot.slane %v312, 1
        %v314 = vadd.f32 %v312, %v313
        %v315 = vsel %vm300, %v294, 0.0
        %v316 = vrot.slane %v315, 4
        %v317 = vadd.f32 %v315, %v316
        %v318 = vrot.slane %v317, 2
        %v319 = vadd.f32 %v317, %v318
        %v320 = vrot.slane %v319, 1
        %v321 = vadd.f32 %v319, %v320
        %v322 = vsel %vm300, %v295, 0.0
        %v323 = vrot.slane %v322, 4
        %v324 = vadd.f32 %v322, %v323
        %v325 = vrot.slane %v324, 2
        %v326 = vadd.f32 %v324, %v325
        %v327 = vrot.slane %v326, 1
        %v328 = vadd.f32 %v326, %v327
        %v329 = vsel %vm300, %v296, 0.0
        %v330 = vrot.slane %v329, 4
        %v331 = vadd.f32 %v329, %v330
        %v332 = vrot.slane %v331, 2
        %v333 = vadd.f32 %v331, %v332
        %v334 = vrot.slane %v333, 1
        %v335 = vadd.f32 %v333, %v334
        %v336 = vsel %vm300, %v297, 0.0
        %v337 = vrot.slane %v336, 4
        %v338 = vadd.f32 %v336, %v337
        %v339 = vrot.slane %v338, 2
        %v340 = vadd.f32 %v338, %v339
        %v341 = vrot.slane %v340, 1
        %v342 = vadd.f32 %v340, %v341
        %v343 = vsel %vm300, %v298, 0.0
        %v344 = vrot.slane %v343, 4
        %v345 = vadd.f32 %v343, %v344
        %v346 = vrot.slane %v345, 2
        %v347 = vadd.f32 %v345, %v346
        %v348 = vrot.slane %v347, 1
        %v349 = vadd.f32 %v347, %v348
        %v350 = vsel %vm300, %v299, 0.0
        %v351 = vrot.slane %v350, 4
        %v352 = vadd.f32 %v350, %v351
        %v353 = vrot.slane %v352, 2
        %v354 = vadd.f32 %v352, %v353
        %v355 = vrot.slane %v354, 1
        %v356 = vadd.f32 %v354, %v355
        %v357 = vld [vmem:[#allocation2] sm:$0xff]
        %v358 = vpack.c.bf16 %v307, %v307
        %v359 = vpack.c.bf16 %v314, %v314
        %v360 = vpack.c.bf16 %v321, %v321
        %v361 = vpack.c.bf16 %v328, %v328
        %v362 = vpack.c.bf16 %v335, %v335
        %v363 = vpack.c.bf16 %v342, %v342
        %v364 = vpack.c.bf16 %v349, %v349
        %v365 = vpack.c.bf16 %v356, %v356
        %v366 = vld [vmem:[%s230] sm:$0xf]
        %v367 = vld [vmem:[%s230 + $0x4] sm:$0xf]
        %v368 = vld [vmem:[%s230 + $0x8] sm:$0xf]
        %v369 = vld [vmem:[%s230 + $0xc] sm:$0xf]
        %v378 = vunpack.c.l.b16 %v358
        %v379 = vunpack.c.l.b16 %v359
        %v380 = vunpack.c.l.b16 %v360
        %v381 = vunpack.c.l.b16 %v361
        %v382 = vunpack.c.l.b16 %v362
        %v383 = vunpack.c.l.b16 %v363
        %v384 = vunpack.c.l.b16 %v364
        %v385 = vunpack.c.l.b16 %v365
        %vm386 = vcmask 1041409
        %v387 = vsel %vm386, %v379, %v378
        %vm388 = vcmask 1042434
        %v389 = vsel %vm388, %v380, %v387
        %vm390 = vcmask 1043459
        %v391 = vsel %vm390, %v381, %v389
        %vm392 = vcmask 1044484
        %v393 = vsel %vm392, %v382, %v391
        %vm394 = vcmask 1045509
        %v395 = vsel %vm394, %v383, %v393
        %vm396 = vcmask 1046534
        %v397 = vsel %vm396, %v384, %v395
        %vm398 = vcmask 1047559
        %v399 = vsel %vm398, %v385, %v397
        %v400 = vpack.c.b16 %v399, %v399
        %v405 = vunpack.c.l.b16 %v366
        %v406 = vunpack.c.l.b16 %v367
        %v407 = vunpack.c.l.b16 %v368
        %v408 = vunpack.c.l.b16 %v369
        %v409 = vpack.c.b16 %v406, %v405
        %v410 = vpack.c.b16 %v408, %v407
        %v414 = vsel %vm300, %v400, 0
        %416 = vmatprep.subr.bf16.mxu0 0
        %417 = vmatpush1.bf16.msra.mxu0 %v409
        %418 = vmatprep.subr.bf16.mxu0 0
        %419 = vmatpush1.bf16.msra.mxu0 %v410
        %420 = vmatprep.subr.bf16.mxu0 0
        %421 = vmatpush1.bf16.msra.mxu0 0
        %422 = vmatprep.subr.bf16.mxu0 0
        %423 = vmatpush1.bf16.msra.mxu0 0
        %424 = vmatprep.subr.bf16.mxu0 0
        %425 = vmatpush1.bf16.msra.mxu0 0
        %426 = vmatprep.subr.bf16.mxu0 0
        %427 = vmatpush1.bf16.msra.mxu0 0
        %428 = vmatprep.subr.bf16.mxu0 0
        %429 = vmatpush1.bf16.msra.mxu0 0
        %430 = vmatprep.subr.bf16.mxu0 0
        %431 = vmatpush1.bf16.msra.mxu0 0
        %432 = vmatprep.subr.bf16.mxu0 0
        %433 = vmatpush1.bf16.msra.mxu0 0
        %434 = vmatprep.subr.bf16.mxu0 0
        %435 = vmatpush1.bf16.msra.mxu0 0
        %436 = vmatprep.subr.bf16.mxu0 0
        %437 = vmatpush1.bf16.msra.mxu0 0
        %438 = vmatprep.subr.bf16.mxu0 0
        %439 = vmatpush1.bf16.msra.mxu0 0
        %440 = vmatprep.subr.bf16.mxu0 0
        %441 = vmatpush1.bf16.msra.mxu0 0
        %442 = vmatprep.subr.bf16.mxu0 0
        %443 = vmatpush1.bf16.msra.mxu0 0
        %444 = vmatprep.subr.bf16.mxu0 0
        %445 = vmatpush1.bf16.msra.mxu0 0
        %446 = vmatprep.subr.bf16.mxu0 0
        %447 = vmatpush1.bf16.msra.mxu0 0
        %448 = vmatprep.mubr.bf16.mxu0 0
        %449 = vmatmul.mubr.bf16.gmra.mrb[0].mxu0 %v414
        %v450 = vpop.f32.mrb[0].mxu0
        %v451 = vadd.f32 0.0, %v450
        %v452 = vpop.f32.mrb[0].mxu0
        %v453 = vpop.f32.mrb[0].mxu0
        %v454 = vpop.f32.mrb[0].mxu0
        %455 = vdwg.mxu0
        %v456 = vadd.f32 %v357, %v451
        %457 = vst.msk [vmem:[#allocation2] sm:$0xff] %vm300, %v456
        %p458 = scmp.eq.s32.totalorder %s23, 1
        // Predicated region
        $region41: #{tpu_custom_call.1} parent=35 // pred_check
          %p459 = pneg %p458
        $region42: #{tpu_custom_call.1} parent=35 // pred_check_branch
          %461 = sbr.rel (%p459) target = $region44
        $region43: #{tpu_custom_call.1} parent=35 // pred_region
          %v462 = vld [vmem:[#allocation2] sm:$0xff]
          %v463 = vmul.f32 %v462, 0.125
          %v464 = vld [vmem:[%s2] sm:$0xff]
          %v465 = vld [vmem:[%s2 + $0x8] sm:$0xff]
          %v466 = vld [vmem:[%s2 + $0x10] sm:$0xff]
          %v467 = vld [vmem:[%s2 + $0x18] sm:$0xff]
          %v468 = vld [vmem:[%s3] sm:$0x1]
          %v470 = vlaneseq
          %v471 = vshrl.u32 %v470, 7
          %v472 = vsub.s32 0, %v471
          %v473 = vrot.slane %v468, %v472
          %v476 = vsel %vm300, %v463, 0
          %478 = vmatprep.subr.mxu0 0.0
          %479 = vmatpush1.msra.mxu0 %v464
          %480 = vmatprep.subr.mxu0 0.0
          %481 = vmatpush1.msra.mxu0 %v465
          %482 = vmatprep.subr.mxu0 0.0
          %483 = vmatpush1.msra.mxu0 %v466
          %484 = vmatprep.subr.mxu0 0.0
          %485 = vmatpush1.msra.mxu0 %v467
          %486 = vmatprep.subr.mxu0 0.0
          %487 = vmatpush1.msra.mxu0 0.0
          %488 = vmatprep.subr.mxu0 0.0
          %489 = vmatpush1.msra.mxu0 0.0
          %490 = vmatprep.subr.mxu0 0.0
          %491 = vmatpush1.msra.mxu0 0.0
          %492 = vmatprep.subr.mxu0 0.0
          %493 = vmatpush1.msra.mxu0 0.0
          %494 = vmatprep.subr.mxu0 0.0
          %495 = vmatpush1.msra.mxu0 0.0
          %496 = vmatprep.subr.mxu0 0.0
          %497 = vmatpush1.msra.mxu0 0.0
          %498 = vmatprep.subr.mxu0 0.0
          %499 = vmatpush1.msra.mxu0 0.0
          %500 = vmatprep.subr.mxu0 0.0
          %501 = vmatpush1.msra.mxu0 0.0
          %502 = vmatprep.subr.mxu0 0.0
          %503 = vmatpush1.msra.mxu0 0.0
          %504 = vmatprep.subr.mxu0 0.0
          %505 = vmatpush1.msra.mxu0 0.0
          %506 = vmatprep.subr.mxu0 0.0
          %507 = vmatpush1.msra.mxu0 0.0
          %508 = vmatprep.subr.mxu0 0.0
          %509 = vmatpush1.msra.mxu0 0.0
          %510 = vmatprep.subr.mxu0 0.0
          %511 = vmatpush1.msra.mxu0 0.0
          %512 = vmatprep.subr.mxu0 0.0
          %513 = vmatpush1.msra.mxu0 0.0
          %514 = vmatprep.subr.mxu0 0.0
          %515 = vmatpush1.msra.mxu0 0.0
          %516 = vmatprep.subr.mxu0 0.0
          %517 = vmatpush1.msra.mxu0 0.0
          %518 = vmatprep.subr.mxu0 0.0
          %519 = vmatpush1.msra.mxu0 0.0
          %520 = vmatprep.subr.mxu0 0.0
          %521 = vmatpush1.msra.mxu0 0.0
          %522 = vmatprep.subr.mxu0 0.0
          %523 = vmatpush1.msra.mxu0 0.0
          %524 = vmatprep.subr.mxu0 0.0
          %525 = vmatpush1.msra.mxu0 0.0
          %526 = vmatprep.subr.mxu0 0.0
          %527 = vmatpush1.msra.mxu0 0.0
          %528 = vmatprep.subr.mxu0 0.0
          %529 = vmatpush1.msra.mxu0 0.0
          %530 = vmatprep.subr.mxu0 0.0
          %531 = vmatpush1.msra.mxu0 0.0
          %532 = vmatprep.subr.mxu0 0.0
          %533 = vmatpush1.msra.mxu0 0.0
          %534 = vmatprep.subr.mxu0 0.0
          %535 = vmatpush1.msra.mxu0 0.0
          %536 = vmatprep.subr.mxu0 0.0
          %537 = vmatpush1.msra.mxu0 0.0
          %538 = vmatprep.subr.mxu0 0.0
          %539 = vmatpush1.msra.mxu0 0.0
          %540 = vmatprep.subr.mxu0 0.0
          %541 = vmatpush1.msra.mxu0 0.0
          %542 = vmatprep.mubr.f32.mxu0 0.0
          %543 = vmatmul.mubr.f32.gmra.mrb[0].mxu0 %v476
          %v544 = vpop.f32.mrb[0].mxu0
          %v545 = vadd.f32 %v473, %v544
          %v546 = vpop.f32.mrb[0].mxu0
          %547 = vdwg.mxu0
          %548 = vst [vmem:[%s219] sm:$0xff] %v545
        $region44: #{tpu_custom_call.1} parent=35 // pred_fallthru
          _
        %s549 = sand.u32 %s132, 1
        %s550 = scalar_lea.sflag [#allocation4], %s549
        %s551 = sand.u32 %s132, 1
        %s552 = smul.addr %s551, 8
        %s553 = scalar_lea.vmem [#allocation3], %s552
        // Predicated region
        $region45: #{tpu_custom_call.1} parent=35 // pred_check
          %p554 = pneg %p142
        $region46: #{tpu_custom_call.1} parent=35 // pred_check_branch
          %556 = sbr.rel (%p554) target = $region48
        $region47: #{tpu_custom_call.1} parent=35 // pred_region
          %s558 = ssub.s32 128, 128
          %559 = vsyncadd %s550, %s558
          %s560 = smul.addr %s22, 128
          %s561 = scalar_lea.hbm %s4, %s560
          %s563 = sshll.u32 %s553, 4
          %s564 = int_to_ptr.vmem [resolvable:$true] %s563
          %566 = dma.vmem_to_hbm [thread:$0]  %s564, 128, %s561, %s550
        $region48: #{tpu_custom_call.1} parent=35 // pred_fallthru
          _
      $region36: #{tpu_custom_call.1} parent=5 // pred_fallthru
        _
      %p567 = scmp.le.s32.totalorder 2, %s13
      // Predicated region
      $region49: #{tpu_custom_call.1} parent=5 // pred_check
        %p568 = pneg %p567
      $region50: #{tpu_custom_call.1} parent=5 // pred_check_branch
        %570 = sbr.rel (%p568) target = $region52
      $region51: #{tpu_custom_call.1} parent=5 // pred_region
        %s571 = ssub.s32 %s13, 2
        // Predicated region
        $region53: #{tpu_custom_call.1} parent=51 // pred_check
          %p572 = pneg %p148
        $region54: #{tpu_custom_call.1} parent=51 // pred_check_branch
          %574 = sbr.rel (%p572) target = $region56
        $region55: #{tpu_custom_call.1} parent=51 // pred_region
          %s575 = sand.u32 %s133, 1
          %s576 = scalar_lea.sflag [#allocation4], %s575
          %s577 = sand.u32 %s133, 1
          %s578 = smul.addr %s577, 8
          %s579 = scalar_lea.vmem [#allocation3], %s578
          %580 = dma.done %s576, 128
        $region56: #{tpu_custom_call.1} parent=51 // pred_fallthru
          _
      $region52: #{tpu_custom_call.1} parent=5 // pred_fallthru
        _
    $region6: #{tpu_custom_call.1} parent=1 // loop_footer
      %s17 = sadd.s32 1, %s13
    $region7: #{tpu_custom_call.1} parent=1 // loop_footer_branch
      %12 = sbr.rel target = $region3
    $region8: #{tpu_custom_call.1} parent=1 // loop_exit
      _
    %581 = vsyncpa [#allocation4], 1
    %s582 = scalar_lea.sflag [#allocation4], 1
    %583 = vsyncpa %s582, 1

</llo_original>
